<compile_context>
chip_gen: v6e
topology: v6e:2x2x1
jax: 0.10.0
libtpu: 0.0.40
codegen_flags: <defaults>
</compile_context>

<pallas_src>
import functools

import jax
import jax.numpy as jnp
from jax.experimental import pallas as pl
from jax.experimental.pallas import tpu as pltpu


# Outer parallel grid axis: uses both TensorCores on v7x; on single-TC chips
# (v5e/v6e) it just serializes with negligible overhead.
_NUM_CORES = 2


# ----------------------------------------------------------------------------
# Helpers
# ----------------------------------------------------------------------------
def _round_up(n, m):
    return ((n + m - 1) // m) * m


def _cdiv(a, b):
    return (a + b - 1) // b


@functools.lru_cache(maxsize=None)
def _vmem_capacity_bytes():
    try:
        return int(pltpu.get_tpu_info().vmem_capacity_bytes)
    except Exception:
        return 64 * 1024 * 1024  # conservative (v7x-sized) fallback


def _tile_plan(B, C, itemsize):
    """Pick (TB, tiles_per_core, vmem_limit) for the (NUM_CORES, tiles) grid."""
    Cp = _round_up(C, 128)                     # lane-padded VMEM row footprint
    sub = 8 * max(1, 4 // max(1, itemsize))    # sublane multiple: 8 f32 / 16 bf16 / 32 i8
    vmem = _vmem_capacity_bytes()
    if vmem >= 96 * 1024 * 1024:               # v5e / v6e: 128 MiB physical VMEM
        budget = 12 * 1024 * 1024
        cap = 4096
        vmem_limit = 64 * 1024 * 1024
    else:                                      # v7x: 64 MiB physical VMEM per TC
        budget = 5 * 1024 * 1024
        cap = 1024
        vmem_limit = 40 * 1024 * 1024
    # Per-row VMEM: double-buffered native-dtype DMA tile + ~3 f32-wide fused
    # temporaries (widened x, lse-x / contrib, mask-as-f32).
    per_row = Cp * (2 * itemsize + 3 * 4)
    budget_tb = budget // max(1, per_row)
    budget_tb = max(sub, min(cap, (budget_tb // sub) * sub))
    # Split the batch over the parallel (core) axis first, then tile each share
    # so the tile count per core is exact (no wasted DMA steps).
    rows_per_core = _cdiv(B, _NUM_CORES)
    tiles_per_core = max(1, _cdiv(rows_per_core, budget_tb))
    tb = _round_up(_cdiv(rows_per_core, tiles_per_core), sub)
    return tb, tiles_per_core, vmem_limit


# ----------------------------------------------------------------------------
# Pallas kernel: per-sample CE + class-distribution weighting + sum + counts
# ----------------------------------------------------------------------------
def _class_balance_kernel(x_ref, y_ref, dist_ref, loss_ref, counts_ref,
                          loss_acc, counts_acc, *, true_b, tb, tiles_per_core):
    c = pl.program_id(0)   # core slot (parallel axis)
    j = pl.program_id(1)   # batch tile within this core (reduction axis)

    @pl.when(j == 0)
    def _init():
        loss_acc[...] = jnp.zeros_like(loss_acc)
        counts_acc[...] = jnp.zeros_like(counts_acc)

    # Native-dtype DMA, widen to f32 only after the load.
    x = x_ref[...].astype(jnp.float32)        # (TB, C) logits
    y = y_ref[...]                            # (TB, 1) i32 labels
    dist = dist_ref[...]                      # (1, C)  f32 per-class weights

    TB, C = x.shape

    # Logical global row index of every row of this tile.  The last tile of a
    # core may overhang the (unpadded) batch: those rows hold unspecified data
    # and are excluded from both the loss sum and the counts.
    row0 = (c * tiles_per_core + j) * tb
    row = row0 + jax.lax.broadcasted_iota(jnp.int32, (TB, 1), 0)
    row_valid = row < true_b                  # (TB, 1)

    col = jax.lax.broadcasted_iota(jnp.int32, (TB, C), 1)
    mask = (col == y) & row_valid             # boolean one-hot; False on invalid rows

    # Numerically-stable log-sum-exp per sample.  All reductions are row-local,
    # so garbage overhang rows cannot contaminate valid rows; garbage values
    # themselves are blocked by the select below (NaN/Inf safe, unlike 0*NaN).
    m = jnp.max(x, axis=-1, keepdims=True)                                # (TB, 1)
    lse = jnp.log(jnp.sum(jnp.exp(x - m), axis=-1, keepdims=True)) + m    # (TB, 1)

    # Fused label-gather + weight-gather:
    #   sum_c onehot[b,c] * dist[c] * (lse[b] - x[b,c])
    #     == dist[y[b]] * (lse[b] - x[b, y[b]])   (weighted per-sample CE)
    contrib = jnp.where(mask, dist * (lse - x), 0.0)                      # (TB, C)
    row_loss = jnp.sum(contrib, axis=-1, keepdims=True)                   # (TB, 1)
    loss_acc[...] += jnp.sum(row_loss, axis=0, keepdims=True)             # (1, 1)

    # Counter(y) for this tile (f32 accumulation: exact up to 2^24 per class).
    counts_acc[...] += jnp.sum(mask.astype(jnp.float32), axis=0, keepdims=True)

    @pl.when(j == pl.num_programs(1) - 1)
    def _finalize():
        loss_ref[...] = loss_acc[...].reshape(loss_ref.shape)
        counts_ref[...] = counts_acc[...].astype(jnp.int32).reshape(counts_ref.shape)


@jax.jit
def _class_balance_call(x, y, dist):
    if not jnp.issubdtype(x.dtype, jnp.floating):
        x = x.astype(jnp.float32)

    B, C = x.shape
    TB, TPC, vmem_limit = _tile_plan(B, C, x.dtype.itemsize)
    n_real_tiles = _cdiv(B, TB)        # tiles that actually intersect the batch

    y2 = y.astype(jnp.int32).reshape(B, 1)
    dist2 = dist.astype(jnp.float32).reshape(1, C)

    def tile_index(c, j):
        # Clamp: logical tiles that lie wholly past the batch re-read the last
        # real tile (fully masked in-kernel) instead of an out-of-range block.
        return jnp.minimum(c * TPC + j, n_real_tiles - 1)

    kernel = functools.partial(_class_balance_kernel, true_b=B, tb=TB,
                               tiles_per_core=TPC)

    loss_parts, count_parts = pl.pallas_call(
        kernel,
        out_shape=(
            jax.ShapeDtypeStruct((_NUM_CORES, 1, 1), jnp.float32),
            jax.ShapeDtypeStruct((_NUM_CORES, 1, C), jnp.int32),
        ),
        grid=(_NUM_CORES, TPC),
        in_specs=[
            pl.BlockSpec((TB, C), lambda c, j: (tile_index(c, j), 0)),   # logits tile
            pl.BlockSpec((TB, 1), lambda c, j: (tile_index(c, j), 0)),   # labels tile
            pl.BlockSpec((1, C), lambda c, j: (0, 0)),                   # weights (resident)
        ],
        out_specs=(
            pl.BlockSpec((1, 1, 1), lambda c, j: (c, 0, 0)),   # per-core loss sum
            pl.BlockSpec((1, 1, C), lambda c, j: (c, 0, 0)),   # per-core class counts
        ),
        scratch_shapes=[
            pltpu.VMEM((1, 1), jnp.float32),   # loss-sum accumulator
            pltpu.VMEM((1, C), jnp.float32),   # counts accumulator
        ],
        compiler_params=pltpu.CompilerParams(
            dimension_semantics=("parallel", "arbitrary"),
            vmem_limit_bytes=vmem_limit,
        ),
    )(x, y2, dist2)

    loss = jnp.sum(loss_parts) / jnp.float32(B)         # scalar mean loss
    counts = jnp.sum(count_parts, axis=(0, 1))          # (C,) int32 class counts
    return loss, counts


# ----------------------------------------------------------------------------
# Python wrapper reproducing the stateful ClassBalance module semantics.
# ----------------------------------------------------------------------------
class ClassBalance:
    """JAX/Pallas port of researchlib.loss.class_balance.ClassBalance
    with f = CrossEntropyLoss(reduction='none')."""

    def __init__(self, num_classes):
        self.num_classes = num_classes
        self.training = True
        self.class_statistics = {}
        self.class_distribution = {}
        self._stats_counts = None      # device-resident (C,) int32 accumulator
        self._dist_device = None       # cached (C,) f32 weight vector
        self._ones_cache = {}

    def train(self):
        self.training = True

    def eval(self):
        self.training = False

    def _ones(self, C):
        if C not in self._ones_cache:
            self._ones_cache[C] = jnp.ones((C,), dtype=jnp.float32)
        return self._ones_cache[C]

    def __call__(self, x, y):
        B, C = x.shape
        if self.training and len(self.class_distribution):
            if self._dist_device is None:
                # Classes never seen keep weight 1.0 (the torch code would
                # KeyError; here unseen-but-counted labels cannot occur).
                self._dist_device = jnp.array(
                    [float(self.class_distribution.get(c, 1.0)) for c in range(C)],
                    dtype=jnp.float32,
                )
            dist = self._dist_device
        else:
            dist = self._ones(C)

        loss, counts = _class_balance_call(x, y, dist)

        if self.training:
            # Device-resident accumulation of the batch Counter — no per-step
            # host sync.
            if self._stats_counts is None:
                self._stats_counts = counts
            else:
                self._stats_counts = self._stats_counts + counts
        elif self._stats_counts is not None:
            # train -> eval transition: build class_distribution from the
            # accumulated statistics (single D2H pull), then clear the stats.
            counts_np = jax.device_get(self._stats_counts)
            for c in range(C):
                n = int(counts_np[c])
                if n > 0:
                    self.class_statistics[c] = self.class_statistics.get(c, 0) + n
            max_ = max(self.class_statistics.values())
            for i in self.class_statistics:
                self.class_distribution[i] = self.class_statistics[i] / float(max_)
            self.class_statistics = {}
            self._stats_counts = None
            self._dist_device = None   # rebuild weights from the new distribution

        return loss


# ----------------------------------------------------------------------------
# Pure-JAX reference for verification.
# ----------------------------------------------------------------------------
def _reference(x, y, dist):
    logp = jax.nn.log_softmax(x.astype(jnp.float32), axis=-1)
    per_sample = -jnp.take_along_axis(logp, y[:, None].astype(jnp.int32), axis=-1)[:, 0]
    return jnp.mean(dist[y] * per_sample)


if __name__ == "__main__":
    key = jax.random.PRNGKey(0)
    B, C = 8, 32
    kx1, kx2, ky1, ky2, kx3, ky3 = jax.random.split(key, 6)

    x1 = jax.random.normal(kx1, (B, C), dtype=jnp.float32)
    y1 = jax.random.randint(ky1, (B,), 0, C, dtype=jnp.int32)
    x2 = jax.random.normal(kx2, (B, C), dtype=jnp.float32)
    y2 = jax.random.randint(ky2, (B,), 0, C, dtype=jnp.int32)

    cb = ClassBalance(num_classes=C)

    # 1) training step, no distribution yet -> plain mean CE, stats accumulated
    l_train0 = cb(x1, y1)
    jax.block_until_ready(l_train0)
    ref0 = _reference(x1, y1, jnp.ones((C,), jnp.float32))
    assert jnp.allclose(l_train0, ref0, rtol=1e-5, atol=1e-5), (l_train0, ref0)

    # 2) eval step -> builds class_distribution from accumulated statistics
    cb.eval()
    l_eval = cb(x2, y2)
    jax.block_until_ready(l_eval)
    ref_eval = _reference(x2, y2, jnp.ones((C,), jnp.float32))
    assert jnp.allclose(l_eval, ref_eval, rtol=1e-5, atol=1e-5), (l_eval, ref_eval)
    assert len(cb.class_distribution) > 0 and len(cb.class_statistics) == 0

    # 3) training step with a distribution -> class-balanced (weighted) mean CE
    cb.train()
    l_train1 = cb(x1, y1)
    jax.block_until_ready(l_train1)
    dist_ref = jnp.array(
        [float(cb.class_distribution.get(c, 1.0)) for c in range(C)], jnp.float32
    )
    ref1 = _reference(x1, y1, dist_ref)
    assert jnp.allclose(l_train1, ref1, rtol=1e-5, atol=1e-5), (l_train1, ref1)

    # 4) ragged / multi-tile / bf16 path: B not a multiple of the tile,
    #    C not a multiple of 128, both core slots active, no input padding.
    B2, C2 = 2000, 200
    x3 = jax.random.normal(kx3, (B2, C2), dtype=jnp.bfloat16)
    y3 = jax.random.randint(ky3, (B2,), 0, C2, dtype=jnp.int32)
    l_big, counts_big = _class_balance_call(x3, y3, jnp.ones((C2,), jnp.float32))
    jax.block_until_ready(l_big)
    ref_big = _reference(x3, y3, jnp.ones((C2,), jnp.float32))
    assert jnp.allclose(l_big, ref_big, rtol=2e-2, atol=2e-2), (l_big, ref_big)
    ref_counts = jnp.bincount(y3, length=C2).astype(jnp.int32)
    assert int(jnp.sum(counts_big)) == B2
    assert bool(jnp.all(counts_big == ref_counts))

    print("KERNEL_OK")
</pallas_src>

<mosaic_0001>
module attributes {stable_mosaic.version = 11 : i64} {
  func.func @_class_balance_kernel(%arg0: i32, %arg1: i32, %arg2: memref<8x32xf32, #tpu.memory_space<vmem>>, %arg3: memref<8x1xi32, #tpu.memory_space<vmem>>, %arg4: memref<1x32xf32, #tpu.memory_space<vmem>>, %arg5: memref<1x1x1xf32, #tpu.memory_space<vmem>>, %arg6: memref<1x1x32xi32, #tpu.memory_space<vmem>>, %arg7: memref<1x1xf32, #tpu.memory_space<vmem>>, %arg8: memref<1x32xf32, #tpu.memory_space<vmem>>) attributes {dimension_semantics = [#tpu.dimension_semantics<parallel>, #tpu.dimension_semantics<arbitrary>], iteration_bounds = array<i64: 2, 1>, scalar_prefetch = 0 : i64, scratch_operands = 2 : i64, tpu.core_type = #tpu.core_type<tc>, window_params = [{transform_indices = @transform_0, window_bounds = array<i64: 8, 32>}, {transform_indices = @transform_1, window_bounds = array<i64: 8, 1>}, {pipeline_mode = #tpu.pipeline_mode<synchronous>, transform_indices = @transform_2, window_bounds = array<i64: 1, 32>}, {transform_indices = @transform_3, window_bounds = array<i64: 1, 1, 1>}, {transform_indices = @transform_4, window_bounds = array<i64: 1, 1, 32>}]} {
    %c0_i32 = arith.constant 0 : i32
    %0 = arith.cmpi eq, %arg1, %c0_i32 : i32
    %1 = arith.extui %0 : i1 to i32
    %c0_i32_0 = arith.constant 0 : i32
    %2 = arith.cmpi ne, %1, %c0_i32_0 : i32
    scf.if %2 {
      %cst_22 = arith.constant 0.000000e+00 : f32
      %51 = vector.broadcast %cst_22 : f32 to vector<1x1xf32>
      %c0_23 = arith.constant 0 : index
      %c0_24 = arith.constant 0 : index
      %52 = vector.load %arg7[%c0_23, %c0_24] : memref<1x1xf32, #tpu.memory_space<vmem>>, vector<1x1xf32>
      tpu.vector_store %arg7[%c0_23, %c0_24], %51 {strides = array<i32>} : memref<1x1xf32, #tpu.memory_space<vmem>>, vector<1x1xf32>,
      %cst_25 = arith.constant 0.000000e+00 : f32
      %53 = vector.broadcast %cst_25 : f32 to vector<1x32xf32>
      %c0_26 = arith.constant 0 : index
      %c0_27 = arith.constant 0 : index
      %54 = vector.load %arg8[%c0_26, %c0_27] : memref<1x32xf32, #tpu.memory_space<vmem>>, vector<1x32xf32>
      tpu.vector_store %arg8[%c0_26, %c0_27], %53 {strides = array<i32>} : memref<1x32xf32, #tpu.memory_space<vmem>>, vector<1x32xf32>,
    } else {
    }
    %c0 = arith.constant 0 : index
    %c0_1 = arith.constant 0 : index
    %3 = vector.load %arg2[%c0, %c0_1] : memref<8x32xf32, #tpu.memory_space<vmem>>, vector<8x32xf32>
    %c0_2 = arith.constant 0 : index
    %c0_3 = arith.constant 0 : index
    %4 = vector.load %arg3[%c0_2, %c0_3] : memref<8x1xi32, #tpu.memory_space<vmem>>, vector<8x1xi32>
    %c0_4 = arith.constant 0 : index
    %c0_5 = arith.constant 0 : index
    %5 = vector.load %arg4[%c0_4, %c0_5] : memref<1x32xf32, #tpu.memory_space<vmem>>, vector<1x32xf32>
    %c1_i32 = arith.constant 1 : i32
    %6 = arith.muli %arg0, %c1_i32 : i32
    %7 = arith.addi %6, %arg1 : i32
    %c8_i32 = arith.constant 8 : i32
    %8 = arith.muli %7, %c8_i32 : i32
    %9 = tpu.iota {dimensions = array<i32: 0>} : vector<8x1xi32>
    %10 = vector.broadcast %8 : i32 to vector<8x1xi32>
    %11 = arith.addi %10, %9 : vector<8x1xi32>
    %c8_i32_6 = arith.constant 8 : i32
    %12 = vector.broadcast %c8_i32_6 : i32 to vector<8x1xi32>
    %13 = arith.cmpi slt, %11, %12 : vector<8x1xi32>
    %14 = tpu.iota {dimensions = array<i32: 1>} : vector<8x32xi32>
    %15 = vector.broadcast %4 : vector<8x1xi32> to vector<8x32xi32>
    %16 = arith.cmpi eq, %14, %15 : vector<8x32xi32>
    %17 = vector.broadcast %13 : vector<8x1xi1> to vector<8x32xi1>
    %18 = arith.andi %16, %17 : vector<8x32xi1>
    %cst = arith.constant dense<0xFF800000> : vector<8xf32>
    %19 = vector.multi_reduction <maximumf>, %3, %cst [1] : vector<8x32xf32> to vector<8xf32>
    %20 = vector.shape_cast %19 : vector<8xf32> to vector<8x1xf32>
    %21 = vector.broadcast %20 : vector<8x1xf32> to vector<8x32xf32>
    %22 = arith.subf %3, %21 : vector<8x32xf32>
    %23 = math.exp %22 : vector<8x32xf32>
    %cst_7 = arith.constant dense<0.000000e+00> : vector<8xf32>
    %24 = vector.multi_reduction <add>, %23, %cst_7 [1] : vector<8x32xf32> to vector<8xf32>
    %25 = vector.shape_cast %24 : vector<8xf32> to vector<8x1xf32>
    %26 = math.log %25 : vector<8x1xf32>
    %27 = arith.addf %26, %20 : vector<8x1xf32>
    %28 = vector.broadcast %27 : vector<8x1xf32> to vector<8x32xf32>
    %29 = arith.subf %28, %3 : vector<8x32xf32>
    %30 = vector.broadcast %5 : vector<1x32xf32> to vector<8x32xf32>
    %31 = arith.mulf %30, %29 : vector<8x32xf32>
    %cst_8 = arith.constant 0.000000e+00 : f32
    %32 = vector.broadcast %cst_8 : f32 to vector<8x32xf32>
    %33 = arith.select %18, %31, %32 : vector<8x32xi1>, vector<8x32xf32>
    %cst_9 = arith.constant dense<0.000000e+00> : vector<8xf32>
    %34 = vector.multi_reduction <add>, %33, %cst_9 [1] : vector<8x32xf32> to vector<8xf32>
    %35 = vector.shape_cast %34 : vector<8xf32> to vector<8x1xf32>
    %c0_10 = arith.constant 0 : index
    %c0_11 = arith.constant 0 : index
    %36 = vector.load %arg7[%c0_10, %c0_11] : memref<1x1xf32, #tpu.memory_space<vmem>>, vector<1x1xf32>
    %cst_12 = arith.constant dense<0.000000e+00> : vector<1xf32>
    %37 = vector.multi_reduction <add>, %35, %cst_12 [0] : vector<8x1xf32> to vector<1xf32>
    %38 = vector.shape_cast %37 : vector<1xf32> to vector<1x1xf32>
    %39 = arith.addf %36, %38 : vector<1x1xf32>
    %c0_13 = arith.constant 0 : index
    %c0_14 = arith.constant 0 : index
    %40 = vector.load %arg7[%c0_13, %c0_14] : memref<1x1xf32, #tpu.memory_space<vmem>>, vector<1x1xf32>
    tpu.vector_store %arg7[%c0_13, %c0_14], %39 {strides = array<i32>} : memref<1x1xf32, #tpu.memory_space<vmem>>, vector<1x1xf32>,
    %c0_15 = arith.constant 0 : index
    %c0_16 = arith.constant 0 : index
    %41 = vector.load %arg8[%c0_15, %c0_16] : memref<1x32xf32, #tpu.memory_space<vmem>>, vector<1x32xf32>
    %42 = arith.extui %18 : vector<8x32xi1> to vector<8x32xi32>
    %43 = arith.sitofp %42 : vector<8x32xi32> to vector<8x32xf32>
    %cst_17 = arith.constant dense<0.000000e+00> : vector<32xf32>
    %44 = vector.multi_reduction <add>, %43, %cst_17 [0] : vector<8x32xf32> to vector<32xf32>
    %45 = vector.shape_cast %44 : vector<32xf32> to vector<1x32xf32>
    %46 = arith.addf %41, %45 : vector<1x32xf32>
    %c0_18 = arith.constant 0 : index
    %c0_19 = arith.constant 0 : index
    %47 = vector.load %arg8[%c0_18, %c0_19] : memref<1x32xf32, #tpu.memory_space<vmem>>, vector<1x32xf32>
    tpu.vector_store %arg8[%c0_18, %c0_19], %46 {strides = array<i32>} : memref<1x32xf32, #tpu.memory_space<vmem>>, vector<1x32xf32>,
    %c0_i32_20 = arith.constant 0 : i32
    %48 = arith.cmpi eq, %arg1, %c0_i32_20 : i32
    %49 = arith.extui %48 : i1 to i32
    %c0_i32_21 = arith.constant 0 : i32
    %50 = arith.cmpi ne, %49, %c0_i32_21 : i32
    scf.if %50 {
      %c0_22 = arith.constant 0 : index
      %c0_23 = arith.constant 0 : index
      %51 = vector.load %arg7[%c0_22, %c0_23] : memref<1x1xf32, #tpu.memory_space<vmem>>, vector<1x1xf32>
      %52 = vector.shape_cast %51 : vector<1x1xf32> to vector<1x1x1xf32>
      %c0_24 = arith.constant 0 : index
      %c0_25 = arith.constant 0 : index
      %c0_26 = arith.constant 0 : index
      %53 = vector.load %arg5[%c0_24, %c0_25, %c0_26] : memref<1x1x1xf32, #tpu.memory_space<vmem>>, vector<1x1x1xf32>
      tpu.vector_store %arg5[%c0_24, %c0_25, %c0_26], %52 {strides = array<i32>} : memref<1x1x1xf32, #tpu.memory_space<vmem>>, vector<1x1x1xf32>,
      %c0_27 = arith.constant 0 : index
      %c0_28 = arith.constant 0 : index
      %54 = vector.load %arg8[%c0_27, %c0_28] : memref<1x32xf32, #tpu.memory_space<vmem>>, vector<1x32xf32>
      %55 = arith.fptosi %54 : vector<1x32xf32> to vector<1x32xi32>
      %56 = vector.shape_cast %55 : vector<1x32xi32> to vector<1x1x32xi32>
      %c0_29 = arith.constant 0 : index
      %c0_30 = arith.constant 0 : index
      %c0_31 = arith.constant 0 : index
      %57 = vector.load %arg6[%c0_29, %c0_30, %c0_31] : memref<1x1x32xi32, #tpu.memory_space<vmem>>, vector<1x1x32xi32>
      tpu.vector_store %arg6[%c0_29, %c0_30, %c0_31], %56 {strides = array<i32>} : memref<1x1x32xi32, #tpu.memory_space<vmem>>, vector<1x1x32xi32>,
    } else {
    }
    return
  }
  func.func @transform_0(%arg0: i32, %arg1: i32) -> (i32, i32) {
    %c1_i32 = arith.constant 1 : i32
    %0 = arith.muli %arg0, %c1_i32 : i32
    %1 = arith.addi %0, %arg1 : i32
    %c0_i32 = arith.constant 0 : i32
    %2 = arith.minsi %1, %c0_i32 : i32
    %c0_i32_0 = arith.constant 0 : i32
    %c0_i32_1 = arith.constant 0 : i32
    return %2, %c0_i32_0 : i32, i32
  }
  func.func @transform_1(%arg0: i32, %arg1: i32) -> (i32, i32) {
    %c1_i32 = arith.constant 1 : i32
    %0 = arith.muli %arg0, %c1_i32 : i32
    %1 = arith.addi %0, %arg1 : i32
    %c0_i32 = arith.constant 0 : i32
    %2 = arith.minsi %1, %c0_i32 : i32
    %c0_i32_0 = arith.constant 0 : i32
    %c0_i32_1 = arith.constant 0 : i32
    return %2, %c0_i32_0 : i32, i32
  }
  func.func @transform_2(%arg0: i32, %arg1: i32) -> (i32, i32) {
    %c0_i32 = arith.constant 0 : i32
    %c0_i32_0 = arith.constant 0 : i32
    %c0_i32_1 = arith.constant 0 : i32
    return %c0_i32, %c0_i32_0 : i32, i32
  }
  func.func @transform_3(%arg0: i32, %arg1: i32) -> (i32, i32, i32) {
    %c0_i32 = arith.constant 0 : i32
    %c0_i32_0 = arith.constant 0 : i32
    %c0_i32_1 = arith.constant 0 : i32
    return %arg0, %c0_i32, %c0_i32_0 : i32, i32, i32
  }
  func.func @transform_4(%arg0: i32, %arg1: i32) -> (i32, i32, i32) {
    %c0_i32 = arith.constant 0 : i32
    %c0_i32_0 = arith.constant 0 : i32
    %c0_i32_1 = arith.constant 0 : i32
    return %arg0, %c0_i32, %c0_i32_0 : i32, i32, i32
  }
}

</mosaic_0001>

<llo_original>
// kernel: _class_balance_call.1
$region0: #{_class_balance_call.1}
  #allocation0 [shape = 'u32[]', space=smem, size = 0x4, offset = 0x4, fixed_abs, tag = 'smem constant byte address 0x4 - core index']
  #allocation1 [shape = 'u32[144,128]{1,0:T(1,128)}', space=vmem, size = 0x12000, scoped, tag = 'internal scratch']
  #allocation2 [shape = 'f32[1,1]{1,0:T(1,128)}', space=vmem, size = 0x200, scoped, tag = 'scratch operand']
  #allocation3 [shape = 'f32[1,32]{1,0:T(1,128)}', space=vmem, size = 0x200, scoped, tag = 'scratch operand']
  %s0 = inlined_call_operand.vmem [shape: f32[8,32], index: 0, kind: input, shape index: {}]
  %s1 = inlined_call_operand.vmem [shape: s32[8,1], index: 1, kind: input, shape index: {}]
  %s2 = inlined_call_operand.vmem [shape: f32[1,32], index: 2, kind: input, shape index: {}]
  %s3 = inlined_call_operand.vmem [shape: f32[2,1,1], index: 3, kind: output, shape index: {0}]
  %s4 = inlined_call_operand.vmem [shape: s32[2,1,32], index: 4, kind: output, shape index: {1}]
  %5 = xla_tuple %s3, %s4
  %s6 = sld [smem:[#allocation0]]
  $region61: #{_class_balance_call.1} parent=0
    _
  %s8 = ssub.s32 1, %s6
  %s9 = scalar_select 0, %s8, %s6
  loop: start=0, step=1, limit=4
  $region2: #{_class_balance_call.1} parent=0 // loop_pre_header
    _
  $region3: #{_class_balance_call.1} parent=0 // loop_header
    %s11 = sphi 0, %s15
    %p12 = scmp.ge.s32.totalorder %s11, 4
    %s18 = sphi 0, %s30
    %s19 = sphi 0, %s26
    %s20 = sphi 0, %s18
    %s21 = sphi 0, %s19
    %s22 = sphi 0, %s20
    %s23 = sphi 0, %s21
    %s39 = sphi 0, %s41
    %s42 = sphi 0, %s39
    %s43 = sphi 0, %s42
    %s59 = sphi 0, %s43
    %s71 = sphi 0, %s73
    %s74 = sphi 0, %s71
    %s75 = sphi 0, %s74
    %s91 = sphi 0, %s75
    %s95 = sphi 0, %s95
    %s97 = sphi 0, %s95
    %s98 = sphi 0, %s97
    %s112 = sphi 0, %s98
    %s118 = sphi 0, %s120
    %s121 = sphi 0, %s118
    %s122 = sphi 0, %s121
    %s138 = sphi 0, %s122
    %s144 = sphi 0, %s146
    %s147 = sphi 0, %s144
    %s148 = sphi 0, %s147
    %s164 = sphi 0, %s148
  $region4: #{_class_balance_call.1} parent=0 // loop_header_branch
    %14 = sbr.rel (%p12) target = $region8
  $region5: #{_class_balance_call.1} parent=0 // loop_body
    %s16 = ssub.s32 %s11, 1
    %s17 = ssub.s32 %s11, 2
    %s24 = sadd.s32 1, %s19
    %p25 = scmp.ge.s32.totalorder %s24, 1
    %s26 = scalar_select %p25, 0, %s24
    %s27 = sadd.s32 1, %s18
    %s28 = scalar_select %p25, %s27, %s18
    %p29 = scmp.ge.s32.totalorder %s28, 2
    %s30 = scalar_select %p29, 0, %s28
    %s31 = sadd.s32 %s18, %s19
    %p32 = scmp.lt.s32.totalorder %s31, 0
    %s33 = scalar_select %p32, %s31, 0
    %s34 = sadd.s32 %s30, %s26
    %p35 = scmp.lt.s32.totalorder %s34, 0
    %s36 = scalar_select %p35, %s34, 0
    %s37 = ssub.s32 %s33, %s36
    %p38 = scmp.eq.s32.totalorder %s37, 0
    %s40 = sadd.s32 %s39, 1
    %s41 = scalar_select %p38, %s39, %s40
    %p44 = pneg %p38
    %p45 = scmp.eq.s32.totalorder %s11, 1
    %p46 = por %p44, %p45
    %p47 = scmp.ne.s32.totalorder %s39, %s42
    %p48 = scmp.eq.s32.totalorder %s11, 0
    %p49 = por %p47, %p48
    %p50 = scmp.ne.s32.totalorder %s39, %s42
    %p51 = scmp.eq.s32.totalorder %s16, 1
    %p52 = por %p50, %p51
    %p53 = scmp.ne.s32.totalorder %s42, %s43
    %p54 = scmp.eq.s32.totalorder %s16, 0
    %p55 = por %p53, %p54
    %p56 = scmp.ne.s32.totalorder %s42, %s43
    %p57 = scmp.eq.s32.totalorder %s17, 1
    %p58 = por %p56, %p57
    %p60 = scmp.ne.s32.totalorder %s43, %s59
    %p61 = scmp.eq.s32.totalorder %s17, 0
    %p62 = por %p60, %p61
    %s63 = sadd.s32 %s18, %s19
    %p64 = scmp.lt.s32.totalorder %s63, 0
    %s65 = scalar_select %p64, %s63, 0
    %s66 = sadd.s32 %s30, %s26
    %p67 = scmp.lt.s32.totalorder %s66, 0
    %s68 = scalar_select %p67, %s66, 0
    %s69 = ssub.s32 %s65, %s68
    %p70 = scmp.eq.s32.totalorder %s69, 0
    %s72 = sadd.s32 %s71, 1
    %s73 = scalar_select %p70, %s71, %s72
    %p76 = pneg %p70
    %p77 = scmp.eq.s32.totalorder %s11, 1
    %p78 = por %p76, %p77
    %p79 = scmp.ne.s32.totalorder %s71, %s74
    %p80 = scmp.eq.s32.totalorder %s11, 0
    %p81 = por %p79, %p80
    %p82 = scmp.ne.s32.totalorder %s71, %s74
    %p83 = scmp.eq.s32.totalorder %s16, 1
    %p84 = por %p82, %p83
    %p85 = scmp.ne.s32.totalorder %s74, %s75
    %p86 = scmp.eq.s32.totalorder %s16, 0
    %p87 = por %p85, %p86
    %p88 = scmp.ne.s32.totalorder %s74, %s75
    %p89 = scmp.eq.s32.totalorder %s17, 1
    %p90 = por %p88, %p89
    %p92 = scmp.ne.s32.totalorder %s75, %s91
    %p93 = scmp.eq.s32.totalorder %s17, 0
    %p94 = por %p92, %p93
    %s96 = sadd.s32 %s95, 1
    %p99 = scmp.eq.s32.totalorder %s11, 1
    %p100 = scmp.ne.s32.totalorder %s95, %s97
    %p101 = scmp.eq.s32.totalorder %s11, 0
    %p102 = por %p100, %p101
    %p103 = scmp.ne.s32.totalorder %s95, %s97
    %p104 = scmp.eq.s32.totalorder %s16, 1
    %p105 = por %p103, %p104
    %p106 = scmp.ne.s32.totalorder %s97, %s98
    %p107 = scmp.eq.s32.totalorder %s16, 0
    %p108 = por %p106, %p107
    %p109 = scmp.ne.s32.totalorder %s97, %s98
    %p110 = scmp.eq.s32.totalorder %s17, 1
    %p111 = por %p109, %p110
    %p113 = scmp.ne.s32.totalorder %s98, %s112
    %p114 = scmp.eq.s32.totalorder %s17, 0
    %p115 = por %p113, %p114
    %s116 = ssub.s32 %s18, %s30
    %p117 = scmp.eq.s32.totalorder %s116, 0
    %s119 = sadd.s32 %s118, 1
    %s120 = scalar_select %p117, %s118, %s119
    %p123 = pneg %p117
    %p124 = scmp.eq.s32.totalorder %s11, 1
    %p125 = por %p123, %p124
    %p126 = scmp.ne.s32.totalorder %s118, %s121
    %p127 = scmp.eq.s32.totalorder %s11, 0
    %p128 = por %p126, %p127
    %p129 = scmp.ne.s32.totalorder %s118, %s121
    %p130 = scmp.eq.s32.totalorder %s16, 1
    %p131 = por %p129, %p130
    %p132 = scmp.ne.s32.totalorder %s121, %s122
    %p133 = scmp.eq.s32.totalorder %s16, 0
    %p134 = por %p132, %p133
    %p135 = scmp.ne.s32.totalorder %s121, %s122
    %p136 = scmp.eq.s32.totalorder %s17, 1
    %p137 = por %p135, %p136
    %p139 = scmp.ne.s32.totalorder %s122, %s138
    %p140 = scmp.eq.s32.totalorder %s17, 0
    %p141 = por %p139, %p140
    %s142 = ssub.s32 %s18, %s30
    %p143 = scmp.eq.s32.totalorder %s142, 0
    %s145 = sadd.s32 %s144, 1
    %s146 = scalar_select %p143, %s144, %s145
    %p149 = pneg %p143
    %p150 = scmp.eq.s32.totalorder %s11, 1
    %p151 = por %p149, %p150
    %p152 = scmp.ne.s32.totalorder %s144, %s147
    %p153 = scmp.eq.s32.totalorder %s11, 0
    %p154 = por %p152, %p153
    %p155 = scmp.ne.s32.totalorder %s144, %s147
    %p156 = scmp.eq.s32.totalorder %s16, 1
    %p157 = por %p155, %p156
    %p158 = scmp.ne.s32.totalorder %s147, %s148
    %p159 = scmp.eq.s32.totalorder %s16, 0
    %p160 = por %p158, %p159
    %p161 = scmp.ne.s32.totalorder %s147, %s148
    %p162 = scmp.eq.s32.totalorder %s17, 1
    %p163 = por %p161, %p162
    %p165 = scmp.ne.s32.totalorder %s148, %s164
    %p166 = scmp.eq.s32.totalorder %s17, 0
    %p167 = por %p165, %p166
    %p168 = scmp.le.s32.totalorder 1, %s11
    %p169 = scmp.lt.s32.totalorder %s11, 3
    %p170 = pnand %p168, %p169
    %p171 = pneg %p170
    // Predicated region
    $region9: #{_class_balance_call.1} parent=5 // pred_check
      _
    $region10: #{_class_balance_call.1} parent=5 // pred_check_branch
      %173 = sbr.rel (%p170) target = $region12
    $region11: #{_class_balance_call.1} parent=5 // pred_region
      %s174 = ssub.s32 %s11, 1
      // Predicated region
      $region13: #{_class_balance_call.1} parent=11 // pred_check
        %p175 = pneg %p108
      $region14: #{_class_balance_call.1} parent=11 // pred_check_branch
        %177 = sbr.rel (%p175) target = $region16
      $region15: #{_class_balance_call.1} parent=11 // pred_region
        _
      $region16: #{_class_balance_call.1} parent=11 // pred_fallthru
        _
    $region12: #{_class_balance_call.1} parent=5 // pred_fallthru
      _
    %p178 = scmp.lt.s32.totalorder %s11, 2
    // Predicated region
    $region17: #{_class_balance_call.1} parent=5 // pred_check
      %p179 = pneg %p178
    $region18: #{_class_balance_call.1} parent=5 // pred_check_branch
      %181 = sbr.rel (%p179) target = $region20
    $region19: #{_class_balance_call.1} parent=5 // pred_region
      // Predicated region
      $region21: #{_class_balance_call.1} parent=19 // pred_check
        %p182 = pneg %p49
      $region22: #{_class_balance_call.1} parent=19 // pred_check_branch
        %184 = sbr.rel (%p182) target = $region24
      $region23: #{_class_balance_call.1} parent=19 // pred_region
        %s185 = sadd.s32 %s18, %s19
        %p186 = scmp.lt.s32.totalorder %s185, 0
        %s187 = scalar_select %p186, %s185, 0
        %p188 = scmp.lt.s32.totalorder %s187, 0
        %s189 = scalar_select %p188, %s187, 0
        %s190 = smul.addr %s189, 8
        %s191 = scalar_lea.vmem %s0, %s190
        %s192 = sadd.s32 %s18, %s19
        %p193 = scmp.lt.s32.totalorder %s192, 0
        %s194 = scalar_select %p193, %s192, 0
      $region24: #{_class_balance_call.1} parent=19 // pred_fallthru
        _
      // Predicated region
      $region25: #{_class_balance_call.1} parent=19 // pred_check
        %p195 = pneg %p81
      $region26: #{_class_balance_call.1} parent=19 // pred_check_branch
        %197 = sbr.rel (%p195) target = $region28
      $region27: #{_class_balance_call.1} parent=19 // pred_region
        %s198 = sadd.s32 %s18, %s19
        %p199 = scmp.lt.s32.totalorder %s198, 0
        %s200 = scalar_select %p199, %s198, 0
        %p201 = scmp.lt.s32.totalorder %s200, 0
        %s202 = scalar_select %p201, %s200, 0
        %s203 = smul.addr %s202, 8
        %s204 = scalar_lea.vmem %s1, %s203
        %s205 = sadd.s32 %s18, %s19
        %p206 = scmp.lt.s32.totalorder %s205, 0
        %s207 = scalar_select %p206, %s205, 0
      $region28: #{_class_balance_call.1} parent=19 // pred_fallthru
        _
    $region20: #{_class_balance_call.1} parent=5 // pred_fallthru
      _
    %p208 = scmp.le.s32.totalorder 1, %s11
    %p209 = scmp.lt.s32.totalorder %s11, 3
    %p210 = pnand %p208, %p209
    %p211 = pneg %p210
    // Predicated region
    $region29: #{_class_balance_call.1} parent=5 // pred_check
      _
    $region30: #{_class_balance_call.1} parent=5 // pred_check_branch
      %213 = sbr.rel (%p210) target = $region32
    $region31: #{_class_balance_call.1} parent=5 // pred_region
      %s214 = ssub.s32 %s11, 1
      %s215 = sadd.s32 %s20, %s21
      %p216 = scmp.lt.s32.totalorder %s215, 0
      %s217 = scalar_select %p216, %s215, 0
      %p218 = scmp.lt.s32.totalorder %s217, 0
      %s219 = scalar_select %p218, %s217, 0
      %s220 = smul.addr %s219, 8
      %s221 = scalar_lea.vmem %s0, %s220
      %p222 = pneg %p55
      %p223 = pneg %p52
      %s224 = sadd.s32 %s20, %s21
      %p225 = scmp.lt.s32.totalorder %s224, 0
      %s226 = scalar_select %p225, %s224, 0
      %p227 = scmp.lt.s32.totalorder %s226, 0
      %s228 = scalar_select %p227, %s226, 0
      %s229 = smul.addr %s228, 8
      %s230 = scalar_lea.vmem %s1, %s229
      %p231 = pneg %p87
      %p232 = pneg %p84
      %p233 = pneg %p108
      %p234 = pneg %p105
      %p235 = pneg %p134
      %p236 = pneg %p131
      %p237 = scmp.lt.s32.totalorder %s20, 1
      %s238 = scalar_select %p237, %s20, 1
      %s239 = scalar_lea.vmem %s3, %s238
      %p240 = pneg %p160
      %p241 = pneg %p157
      %p242 = scmp.lt.s32.totalorder %s20, 1
      %s243 = scalar_select %p242, %s20, 1
      %s244 = scalar_lea.vmem %s4, %s243
      %s245 = sadd.s32 %s20, %s21
      %p246 = scmp.lt.s32.totalorder %s245, 0
      %s247 = scalar_select %p246, %s245, 0
      %p248 = scmp.lt.s32.totalorder %s247, 0
      %s249 = scalar_select %p248, %s247, 0
      %s250 = smul.addr %s249, 8
      %s251 = scalar_lea.vmem %s0, %s250
      %s252 = sadd.s32 %s20, %s21
      %p253 = scmp.lt.s32.totalorder %s252, 0
      %s254 = scalar_select %p253, %s252, 0
      %s255 = sadd.s32 %s20, %s21
      %p256 = scmp.lt.s32.totalorder %s255, 0
      %s257 = scalar_select %p256, %s255, 0
      %p258 = scmp.lt.s32.totalorder %s257, 0
      %s259 = scalar_select %p258, %s257, 0
      %s260 = smul.addr %s259, 8
      %s261 = scalar_lea.vmem %s1, %s260
      %s262 = sadd.s32 %s20, %s21
      %p263 = scmp.lt.s32.totalorder %s262, 0
      %s264 = scalar_select %p263, %s262, 0
      %p265 = scmp.lt.s32.totalorder %s20, 1
      %s266 = scalar_select %p265, %s20, 1
      %s267 = scalar_lea.vmem %s3, %s266
      %p268 = scmp.lt.s32.totalorder %s20, 1
      %s269 = scalar_select %p268, %s20, 1
      %s270 = scalar_lea.vmem %s4, %s269
      %p271 = scmp.eq.s32.totalorder %s21, 0
      // Predicated region
      $region33: #{_class_balance_call.1} parent=31 // pred_check
        %p272 = pneg %p271
      $region34: #{_class_balance_call.1} parent=31 // pred_check_branch
        %274 = sbr.rel (%p272) target = $region36
      $region35: #{_class_balance_call.1} parent=31 // pred_region
        %vm275 = vcmask 0
        %276 = vst.msk [vmem:[#allocation2] sm:$0x1] %vm275, 0.0
        %vm277 = vcmask 253952
        %278 = vst.msk [vmem:[#allocation3] sm:$0x1] %vm277, 0.0
      $region36: #{_class_balance_call.1} parent=31 // pred_fallthru
        _
      %v279 = vld [vmem:[%s251] sm:$0xff]
      %v280 = vld [vmem:[%s261] sm:$0xff]
      %v281 = vld [vmem:[%s2] sm:$0x1]
      %s282 = sadd.s32 %s20, %s21
      %s283 = smul.u32 %s282, 8
      %v284 = vlaneseq
      %v285 = vshrl.u32 %v284, 7
      %v286 = vstv %s283
      %v287 = vadd.s32 %v286, %v285
      %vm288 = vcmp.lt.s32.totalorder %v287, 8
      %v289 = vlaneseq
      %v290 = vand.u32 %v289, 127
      %291 = vset.pattern.permute.xlu0 0
      %292 = vperm.xlu0 %291, %v280
      %v293 = vpop.permute.xlu0 %292
      %vm294 = vcmp.eq.s32.totalorder %v290, %v293
      %v295 = vsel %vm288, 1, 0
      %vm296 = vcmp.eq.s32.totalorder %v295, 1
      %vm297 = vmand %vm294, %vm296
      %vm298 = vcmask 261120
      %v299 = vsel %vm298, %v279, -inf
      %300 = vmax.xlane.f32.xlu0 %v299
      %v301 = vpop.xlane.xlu0 %300
      %v302 = vsub.f32 %v279, %v301
      %v303 = vmul.f32 %v302, 1.442695
      %v304 = vpow.pop %v303
      %v305 = vsel %vm298, %v304, 0.0
      %306 = vadd.xlane.f32.xlu0 %v305
      %v307 = vpop.xlane.xlu0 %306
      %v308 = vlog2.pop %v307
      %v309 = vmul.f32 %v308, 0.6931472
      %v310 = vadd.f32 %v309, %v301
      %v311 = vsub.f32 %v310, %v279
      %v313 = vlaneseq
      %v314 = vshrl.u32 %v313, 7
      %v315 = vsub.s32 0, %v314
      %v316 = vrot.slane %v281, %v315
      %v318 = vmul.f32 %v316, %v311
      %v319 = vsel %vm297, %v318, 0.0
      %v320 = vsel %vm298, %v319, 0.0
      %321 = vadd.xlane.f32.xlu0 %v320
      %v322 = vpop.xlane.xlu0 %321
      %v323 = vld [vmem:[#allocation2] sm:$0x1]
      %v324 = vrot.slane %v322, 4
      %v325 = vadd.f32 %v322, %v324
      %v326 = vrot.slane %v325, 2
      %v327 = vadd.f32 %v325, %v326
      %v328 = vrot.slane %v327, 1
      %v329 = vadd.f32 %v327, %v328
      %v330 = vadd.f32 %v323, %v329
      %vm331 = vcmask 0
      %332 = vst.msk [vmem:[#allocation2] sm:$0x1] %vm331, %v330
      %v333 = vld [vmem:[#allocation3] sm:$0x1]
      %v334 = vsel %vm297, 1, 0
      %v335 = vcvt.s32.f32 %v334
      %v336 = vsel %vm298, %v335, 0.0
      %v337 = vrot.slane %v336, 4
      %v338 = vadd.f32 %v336, %v337
      %v339 = vrot.slane %v338, 2
      %v340 = vadd.f32 %v338, %v339
      %v341 = vrot.slane %v340, 1
      %v342 = vadd.f32 %v340, %v341
      %v343 = vadd.f32 %v333, %v342
      %vm344 = vcmask 253952
      %345 = vst.msk [vmem:[#allocation3] sm:$0x1] %vm344, %v343
      // Predicated region
      $region37: #{_class_balance_call.1} parent=31 // pred_check
        %p346 = pneg %p271
      $region38: #{_class_balance_call.1} parent=31 // pred_check_branch
        %348 = sbr.rel (%p346) target = $region40
      $region39: #{_class_balance_call.1} parent=31 // pred_region
        %v349 = vld [vmem:[#allocation2] sm:$0x1]
        %350 = vst.msk [vmem:[%s267] sm:$0x1] %vm331, %v349
        %v351 = vld [vmem:[#allocation3] sm:$0x1]
        %v352 = vcvt.f32.s32.to.zero.pseudo %v351
        %353 = vst.msk [vmem:[%s270] sm:$0x1] %vm344, %v352
      $region40: #{_class_balance_call.1} parent=31 // pred_fallthru
        _
      %p354 = scmp.lt.s32.totalorder %s20, 1
      %s355 = scalar_select %p354, %s20, 1
      %s356 = scalar_lea.vmem %s3, %s355
      %p357 = scmp.lt.s32.totalorder %s20, 1
      %s358 = scalar_select %p357, %s20, 1
      %s359 = scalar_lea.vmem %s4, %s358
      // Predicated region
      $region41: #{_class_balance_call.1} parent=31 // pred_check
        %p360 = pneg %p131
      $region42: #{_class_balance_call.1} parent=31 // pred_check_branch
        %362 = sbr.rel (%p360) target = $region44
      $region43: #{_class_balance_call.1} parent=31 // pred_region
        _
      $region44: #{_class_balance_call.1} parent=31 // pred_fallthru
        _
      // Predicated region
      $region45: #{_class_balance_call.1} parent=31 // pred_check
        %p363 = pneg %p157
      $region46: #{_class_balance_call.1} parent=31 // pred_check_branch
        %365 = sbr.rel (%p363) target = $region48
      $region47: #{_class_balance_call.1} parent=31 // pred_region
        _
      $region48: #{_class_balance_call.1} parent=31 // pred_fallthru
        _
    $region32: #{_class_balance_call.1} parent=5 // pred_fallthru
      _
    %p366 = scmp.le.s32.totalorder 2, %s11
    // Predicated region
    $region49: #{_class_balance_call.1} parent=5 // pred_check
      %p367 = pneg %p366
    $region50: #{_class_balance_call.1} parent=5 // pred_check_branch
      %369 = sbr.rel (%p367) target = $region52
    $region51: #{_class_balance_call.1} parent=5 // pred_region
      %s370 = ssub.s32 %s11, 2
      // Predicated region
      $region53: #{_class_balance_call.1} parent=51 // pred_check
        %p371 = pneg %p137
      $region54: #{_class_balance_call.1} parent=51 // pred_check_branch
        %373 = sbr.rel (%p371) target = $region56
      $region55: #{_class_balance_call.1} parent=51 // pred_region
        %p374 = scmp.lt.s32.totalorder %s22, 1
        %s375 = scalar_select %p374, %s22, 1
        %s376 = scalar_lea.vmem %s3, %s375
      $region56: #{_class_balance_call.1} parent=51 // pred_fallthru
        _
      // Predicated region
      $region57: #{_class_balance_call.1} parent=51 // pred_check
        %p377 = pneg %p163
      $region58: #{_class_balance_call.1} parent=51 // pred_check_branch
        %379 = sbr.rel (%p377) target = $region60
      $region59: #{_class_balance_call.1} parent=51 // pred_region
        %p380 = scmp.lt.s32.totalorder %s22, 1
        %s381 = scalar_select %p380, %s22, 1
        %s382 = scalar_lea.vmem %s4, %s381
      $region60: #{_class_balance_call.1} parent=51 // pred_fallthru
        _
    $region52: #{_class_balance_call.1} parent=5 // pred_fallthru
      _
  $region6: #{_class_balance_call.1} parent=0 // loop_footer
    %s15 = sadd.s32 1, %s11
  $region7: #{_class_balance_call.1} parent=0 // loop_footer_branch
    %10 = sbr.rel target = $region3
  $region8: #{_class_balance_call.1} parent=0 // loop_exit
    _

</llo_original>
